<compile_context>
chip_gen: v7x
topology: tpu7x:2x2x1
jax: 0.10.0
libtpu: 0.0.40
codegen_flags: <defaults>
</compile_context>

<pallas_src>
import functools
import math

import jax
import jax.numpy as jnp
from jax.experimental import pallas as pl
from jax.experimental.pallas import tpu as pltpu


def _round_up(v, m):
    return ((v + m - 1) // m) * m


def _mlp_kernel(x_ref, *refs, num_layers, matmul_dtype):
    """refs = (w0, b0, w1, b1, ..., w_{L-1}, b_{L-1}, o_ref)."""
    o_ref = refs[-1]
    wb = refs[:-1]

    h = x_ref[...]
    if h.dtype != matmul_dtype:
        h = h.astype(matmul_dtype)

    for layer in range(num_layers):
        w = wb[2 * layer][...]
        if w.dtype != matmul_dtype:
            w = w.astype(matmul_dtype)
        b = wb[2 * layer + 1][...].astype(jnp.float32)          # (1, d_out)
        acc = jnp.dot(h, w, preferred_element_type=jnp.float32) + b
        if layer < num_layers - 1:
            acc = jnp.tanh(acc)                                 # f32 on the EUP
            h = acc.astype(matmul_dtype)
        else:
            h = acc
    o_ref[...] = h.astype(o_ref.dtype)


def mlp_forward(x, weights, biases, *, block_rows=512):
    """Fused MLP forward.

    x:        (..., f_in)
    weights:  list of (d_in, d_out) matrices (already in x @ W layout)
    biases:   list of (d_out,) vectors
    returns:  (..., f_out)
    """
    num_layers = len(weights)
    assert len(biases) == num_layers and num_layers >= 1
    f_in = weights[0].shape[0]
    f_out = weights[-1].shape[1]
    assert x.shape[-1] == f_in

    orig_lead = x.shape[:-1]
    n_rows = math.prod(orig_lead) if orig_lead else 1
    x2d = x.reshape(n_rows, f_in)

    # ---- Pad every feature dim to a multiple of 128 lanes (exact with zeros:
    # padded input lanes are zero, padded weight rows/cols and biases are zero,
    # tanh(0) == 0, so padded hidden lanes stay zero through the whole stack).
    dims = [f_in] + [w.shape[1] for w in weights]
    dims_p = [_round_up(d, 128) for d in dims]
    f_in_p, f_out_p = dims_p[0], dims_p[-1]

    if f_in_p != f_in:
        x2d = jnp.pad(x2d, ((0, 0), (0, f_in_p - f_in)))

    w_p, b_p = [], []
    for i, (w, b) in enumerate(zip(weights, biases)):
        di, do = w.shape
        dip, dop = dims_p[i], dims_p[i + 1]
        if (dip, dop) != (di, do):
            w = jnp.pad(w, ((0, dip - di), (0, dop - do)))
        if dop != do:
            b = jnp.pad(b, (0, dop - do))
        w_p.append(w)
        b_p.append(b.reshape(1, dop))

    # ---- dtype handling: bf16 MXU fast path only when the model is bf16.
    if x.dtype == jnp.bfloat16 and all(w.dtype == jnp.bfloat16 for w in weights):
        matmul_dtype = jnp.bfloat16
    else:
        matmul_dtype = jnp.float32
    out_dtype = x.dtype

    # ---- Row-tile selection.
    itemsize = jnp.dtype(x.dtype).itemsize
    gran = {4: 8, 2: 16, 1: 32}[itemsize]          # sublane granularity per dtype
    br = min(int(block_rows), _round_up(n_rows, gran))
    br = max(gran, (br // gran) * gran)
    if br >= 256:
        br = (br // 256) * 256                      # full 256-row MXU passes (v6e/v7x)

    def vmem_estimate(rows):
        est = 2 * rows * f_in_p * itemsize                                # x stream (double buf)
        est += 2 * rows * f_out_p * jnp.dtype(out_dtype).itemsize         # out stream (double buf)
        est += sum(int(w.size) * w.dtype.itemsize for w in w_p)           # weights, Buffered(1)
        est += sum(8 * b.shape[1] * b.dtype.itemsize for b in b_p)        # biases (sublane-padded)
        est += 2 * rows * max(dims_p) * 4                                 # in-flight f32 activations
        return est

    VMEM_TARGET = 40 * (1 << 20)                    # comfortably under v7x's 64 MiB
    while br > gran and vmem_estimate(br) > VMEM_TARGET:
        br = max(gran, ((br // 2) // gran) * gran)

    vmem_limit = int(min(max(2 * vmem_estimate(br), 32 << 20), 60 << 20))

    grid = (pl.cdiv(n_rows, br),)                   # edge block masked by Pallas

    # ---- Specs: x/out tiled over rows; weights/biases resident, single-buffered.
    in_specs = [pl.BlockSpec((br, f_in_p), lambda i: (i, 0))]
    args = [x2d]
    for w, b in zip(w_p, b_p):
        dip, dop = w.shape
        in_specs.append(pl.BlockSpec((dip, dop), lambda i: (0, 0),
                                     pipeline_mode=pl.Buffered(1)))
        in_specs.append(pl.BlockSpec((1, dop), lambda i: (0, 0),
                                     pipeline_mode=pl.Buffered(1)))
        args.append(w)
        args.append(b)

    kernel = functools.partial(_mlp_kernel, num_layers=num_layers,
                               matmul_dtype=matmul_dtype)

    y2d = pl.pallas_call(
        kernel,
        out_shape=jax.ShapeDtypeStruct((n_rows, f_out_p), out_dtype),
        grid_spec=pltpu.PrefetchScalarGridSpec(
            num_scalar_prefetch=0,
            grid=grid,
            in_specs=in_specs,
            out_specs=pl.BlockSpec((br, f_out_p), lambda i: (i, 0)),
        ),
        compiler_params=pltpu.CompilerParams(
            dimension_semantics=("parallel",),
            vmem_limit_bytes=vmem_limit),
    )(*args)

    if f_out_p != f_out:
        y2d = y2d[:, :f_out]
    return y2d.reshape(*orig_lead, f_out)


def _mlp_reference(x, weights, biases):
    h = x.astype(jnp.float32)
    for i, (w, b) in enumerate(zip(weights, biases)):
        h = h @ w.astype(jnp.float32) + b.astype(jnp.float32)
        if i < len(weights) - 1:
            h = jnp.tanh(h)
    return h.astype(x.dtype)


def _init_linear(key, d_in, d_out, dtype=jnp.float32):
    # PyTorch nn.Linear default init: U(-1/sqrt(fan_in), 1/sqrt(fan_in)).
    kw, kb = jax.random.split(key)
    bound = 1.0 / math.sqrt(d_in)
    w = jax.random.uniform(kw, (d_in, d_out), dtype, -bound, bound)
    b = jax.random.uniform(kb, (d_out,), dtype, -bound, bound)
    return w, b


if __name__ == "__main__":
    # Small shapes consistent with the module: x is (batch, seq, f_in);
    # hidden_dim = 128 (module default), hidden_layers = 3 exercises the
    # middle Linear+tanh block, f_out = 128 keeps the output lane-dense.
    # f_in = 32 exercises the wrapper's 128-lane zero padding.
    B, L = 2, 16
    f_in, hidden_dim, f_out = 32, 128, 128
    hidden_layers = 3

    key = jax.random.PRNGKey(0)
    kx, *kl = jax.random.split(key, 1 + hidden_layers)

    x = jax.random.normal(kx, (B, L, f_in), dtype=jnp.float32)

    dims = [f_in] + [hidden_dim] * (hidden_layers - 1) + [f_out]
    weights, biases = [], []
    for i in range(hidden_layers):
        w, b = _init_linear(kl[i], dims[i], dims[i + 1])
        weights.append(w)
        biases.append(b)

    # Default block_rows (auto-clamped to the 32 rows of this tiny demo).
    y = mlp_forward(x, weights, biases)
    jax.block_until_ready(y)

    assert y.shape == (B, L, f_out)

    y_ref = _mlp_reference(x, weights, biases)
    assert jnp.allclose(y, y_ref, rtol=1e-4, atol=1e-4), (
        "mismatch vs reference, max abs diff = "
        f"{float(jnp.max(jnp.abs(y - y_ref)))}")

    print("KERNEL_OK")
</pallas_src>

<mosaic_0001>
module attributes {stable_mosaic.version = 11 : i64} {
  func.func @_mlp_kernel(%arg0: i32, %arg1: memref<32x128xf32, #tpu.memory_space<vmem>>, %arg2: memref<128x128xf32, #tpu.memory_space<vmem>>, %arg3: memref<1x128xf32, #tpu.memory_space<vmem>>, %arg4: memref<128x128xf32, #tpu.memory_space<vmem>>, %arg5: memref<1x128xf32, #tpu.memory_space<vmem>>, %arg6: memref<128x128xf32, #tpu.memory_space<vmem>>, %arg7: memref<1x128xf32, #tpu.memory_space<vmem>>, %arg8: memref<32x128xf32, #tpu.memory_space<vmem>>) attributes {dimension_semantics = [#tpu.dimension_semantics<parallel>], iteration_bounds = array<i64: 1>, scalar_prefetch = 0 : i64, scratch_operands = 0 : i64, tpu.core_type = #tpu.core_type<tc>, window_params = [{transform_indices = @transform_0, window_bounds = array<i64: 32, 128>}, {pipeline_mode = #tpu.pipeline_mode<synchronous>, transform_indices = @transform_1, window_bounds = array<i64: 128, 128>}, {pipeline_mode = #tpu.pipeline_mode<synchronous>, transform_indices = @transform_2, window_bounds = array<i64: 1, 128>}, {pipeline_mode = #tpu.pipeline_mode<synchronous>, transform_indices = @transform_3, window_bounds = array<i64: 128, 128>}, {pipeline_mode = #tpu.pipeline_mode<synchronous>, transform_indices = @transform_4, window_bounds = array<i64: 1, 128>}, {pipeline_mode = #tpu.pipeline_mode<synchronous>, transform_indices = @transform_5, window_bounds = array<i64: 128, 128>}, {pipeline_mode = #tpu.pipeline_mode<synchronous>, transform_indices = @transform_6, window_bounds = array<i64: 1, 128>}, {transform_indices = @transform_7, window_bounds = array<i64: 32, 128>}]} {
    %c0 = arith.constant 0 : index
    %c0_0 = arith.constant 0 : index
    %0 = vector.load %arg1[%c0, %c0_0] : memref<32x128xf32, #tpu.memory_space<vmem>>, vector<32x128xf32>
    %c0_1 = arith.constant 0 : index
    %c0_2 = arith.constant 0 : index
    %1 = vector.load %arg2[%c0_1, %c0_2] : memref<128x128xf32, #tpu.memory_space<vmem>>, vector<128x128xf32>
    %c0_3 = arith.constant 0 : index
    %c0_4 = arith.constant 0 : index
    %2 = vector.load %arg3[%c0_3, %c0_4] : memref<1x128xf32, #tpu.memory_space<vmem>>, vector<1x128xf32>
    %cst = arith.constant dense<0.000000e+00> : vector<32x128xf32>
    %3 = tpu.matmul %0, %1, %cst {dimension_numbers = #tpu.dot_dimension_numbers<[1], [0], [0], [1], [0, 0, 1, 1], [], []>} : vector<32x128xf32>, vector<128x128xf32>, vector<32x128xf32> -> vector<32x128xf32>
    %4 = vector.broadcast %2 : vector<1x128xf32> to vector<32x128xf32>
    %5 = arith.addf %3, %4 : vector<32x128xf32>
    %6 = math.tanh %5 : vector<32x128xf32>
    %c0_5 = arith.constant 0 : index
    %c0_6 = arith.constant 0 : index
    %7 = vector.load %arg4[%c0_5, %c0_6] : memref<128x128xf32, #tpu.memory_space<vmem>>, vector<128x128xf32>
    %c0_7 = arith.constant 0 : index
    %c0_8 = arith.constant 0 : index
    %8 = vector.load %arg5[%c0_7, %c0_8] : memref<1x128xf32, #tpu.memory_space<vmem>>, vector<1x128xf32>
    %cst_9 = arith.constant dense<0.000000e+00> : vector<32x128xf32>
    %9 = tpu.matmul %6, %7, %cst_9 {dimension_numbers = #tpu.dot_dimension_numbers<[1], [0], [0], [1], [0, 0, 1, 1], [], []>} : vector<32x128xf32>, vector<128x128xf32>, vector<32x128xf32> -> vector<32x128xf32>
    %10 = vector.broadcast %8 : vector<1x128xf32> to vector<32x128xf32>
    %11 = arith.addf %9, %10 : vector<32x128xf32>
    %12 = math.tanh %11 : vector<32x128xf32>
    %c0_10 = arith.constant 0 : index
    %c0_11 = arith.constant 0 : index
    %13 = vector.load %arg6[%c0_10, %c0_11] : memref<128x128xf32, #tpu.memory_space<vmem>>, vector<128x128xf32>
    %c0_12 = arith.constant 0 : index
    %c0_13 = arith.constant 0 : index
    %14 = vector.load %arg7[%c0_12, %c0_13] : memref<1x128xf32, #tpu.memory_space<vmem>>, vector<1x128xf32>
    %cst_14 = arith.constant dense<0.000000e+00> : vector<32x128xf32>
    %15 = tpu.matmul %12, %13, %cst_14 {dimension_numbers = #tpu.dot_dimension_numbers<[1], [0], [0], [1], [0, 0, 1, 1], [], []>} : vector<32x128xf32>, vector<128x128xf32>, vector<32x128xf32> -> vector<32x128xf32>
    %16 = vector.broadcast %14 : vector<1x128xf32> to vector<32x128xf32>
    %17 = arith.addf %15, %16 : vector<32x128xf32>
    %c0_15 = arith.constant 0 : index
    %c0_16 = arith.constant 0 : index
    %18 = vector.load %arg8[%c0_15, %c0_16] : memref<32x128xf32, #tpu.memory_space<vmem>>, vector<32x128xf32>
    tpu.vector_store %arg8[%c0_15, %c0_16], %17 {strides = array<i32>} : memref<32x128xf32, #tpu.memory_space<vmem>>, vector<32x128xf32>,
    return
  }
  func.func @transform_0(%arg0: i32) -> (i32, i32) {
    %c0_i32 = arith.constant 0 : i32
    %c0_i32_0 = arith.constant 0 : i32
    return %arg0, %c0_i32 : i32, i32
  }
  func.func @transform_1(%arg0: i32) -> (i32, i32) {
    %c0_i32 = arith.constant 0 : i32
    %c0_i32_0 = arith.constant 0 : i32
    %c0_i32_1 = arith.constant 0 : i32
    return %c0_i32, %c0_i32_0 : i32, i32
  }
  func.func @transform_2(%arg0: i32) -> (i32, i32) {
    %c0_i32 = arith.constant 0 : i32
    %c0_i32_0 = arith.constant 0 : i32
    %c0_i32_1 = arith.constant 0 : i32
    return %c0_i32, %c0_i32_0 : i32, i32
  }
  func.func @transform_3(%arg0: i32) -> (i32, i32) {
    %c0_i32 = arith.constant 0 : i32
    %c0_i32_0 = arith.constant 0 : i32
    %c0_i32_1 = arith.constant 0 : i32
    return %c0_i32, %c0_i32_0 : i32, i32
  }
  func.func @transform_4(%arg0: i32) -> (i32, i32) {
    %c0_i32 = arith.constant 0 : i32
    %c0_i32_0 = arith.constant 0 : i32
    %c0_i32_1 = arith.constant 0 : i32
    return %c0_i32, %c0_i32_0 : i32, i32
  }
  func.func @transform_5(%arg0: i32) -> (i32, i32) {
    %c0_i32 = arith.constant 0 : i32
    %c0_i32_0 = arith.constant 0 : i32
    %c0_i32_1 = arith.constant 0 : i32
    return %c0_i32, %c0_i32_0 : i32, i32
  }
  func.func @transform_6(%arg0: i32) -> (i32, i32) {
    %c0_i32 = arith.constant 0 : i32
    %c0_i32_0 = arith.constant 0 : i32
    %c0_i32_1 = arith.constant 0 : i32
    return %c0_i32, %c0_i32_0 : i32, i32
  }
  func.func @transform_7(%arg0: i32) -> (i32, i32) {
    %c0_i32 = arith.constant 0 : i32
    %c0_i32_0 = arith.constant 0 : i32
    return %arg0, %c0_i32 : i32, i32
  }
}

</mosaic_0001>

<llo_original>
// kernel: tpu_custom_call.1
$region0: #{tpu_custom_call.1}
  #allocation0 [shape = 'u32[]', space=smem, size = 0x4, offset = 0x4, fixed_abs, tag = 'smem constant byte address 0x4 - core index']
  #allocation1 [shape = 'u32[144,128]{1,0:T(1,128)}', space=vmem, size = 0x12000, scoped, tag = 'internal scratch']
  %s0 = inlined_call_operand.hbm [shape: f32[32,128], index: 0, kind: input, shape index: {}]
  %s1 = inlined_call_operand.hbm [shape: f32[128,128], index: 1, kind: input, shape index: {}]
  %s2 = inlined_call_operand.vmem [shape: f32[1,128], index: 2, kind: input, shape index: {}]
  %s3 = inlined_call_operand.hbm [shape: f32[128,128], index: 3, kind: input, shape index: {}]
  %s4 = inlined_call_operand.vmem [shape: f32[1,128], index: 4, kind: input, shape index: {}]
  %s5 = inlined_call_operand.hbm [shape: f32[128,128], index: 5, kind: input, shape index: {}]
  %s6 = inlined_call_operand.vmem [shape: f32[1,128], index: 6, kind: input, shape index: {}]
  %s7 = inlined_call_operand.hbm [shape: f32[32,128], index: 7, kind: output, shape index: {}]
  %s8 = sld [smem:[#allocation0]]
  $region54: #{tpu_custom_call.1} parent=0
    _
  %s10 = ssub.s32 1, %s8
  %s11 = scalar_select 0, %s10, %s8
  $region1: #{tpu_custom_call.1} parent=0
    #allocation2 [shape = 'u8[16384]{0}', space=vmem, size = 0x4000, scoped, tag = 'input window, operand 0, single buffered']
    #allocation3 [shape = 's32[1]{0}', space=sflag, size = 0x4, scoped, tag = 'scoped memory for tpu_custom_call.1']
    #allocation4 [shape = 's32[1]{0}', space=sflag, size = 0x4, scoped, tag = 'scoped memory for tpu_custom_call.1']
    #allocation5 [shape = 'u8[65536]{0}', space=vmem, size = 0x10000, scoped, tag = 'input window, operand 1, single buffered']
    #allocation6 [shape = 's32[1]{0}', space=sflag, size = 0x4, scoped, tag = 'scoped memory for tpu_custom_call.1']
    #allocation7 [shape = 'u8[65536]{0}', space=vmem, size = 0x10000, scoped, tag = 'input window, operand 3, single buffered']
    #allocation8 [shape = 'u8[65536]{0}', space=vmem, size = 0x10000, scoped, tag = 'input window, operand 5, single buffered']
    #allocation9 [shape = 's32[1]{0}', space=sflag, size = 0x4, scoped, tag = 'scoped memory for tpu_custom_call.1']
    #allocation10 [shape = 'u8[16384]{0}', space=vmem, size = 0x4000, scoped, tag = 'output window, operand 0, single buffered']
    %12 = vsyncpa [#allocation3], 0
    %13 = vsyncpa [#allocation6], 0
    %14 = vsyncpa [#allocation9], 0
    %15 = vsyncpa [#allocation4], 0
    // Predicated region
    $region2: #{tpu_custom_call.1} parent=1 // pred_check
      _
    $region3: #{tpu_custom_call.1} parent=1 // pred_check_branch
      %17 = sbr.rel (0) target = $region5
    $region4: #{tpu_custom_call.1} parent=1 // pred_region
      %s19 = ssub.s32 512, 512
      %20 = vsyncadd [#allocation3], %s19
      %s21 = sshll.u32 [#allocation2], 4
      %s22 = int_to_ptr.vmem [resolvable:$true] %s21
      %27 = dma.hbm_to_vmem [thread:$0]  %s0, 512, %s22, [#allocation3], 128, 128, 8
    $region5: #{tpu_custom_call.1} parent=1 // pred_fallthru
      _
    // Predicated region
    $region6: #{tpu_custom_call.1} parent=1 // pred_check
      _
    $region7: #{tpu_custom_call.1} parent=1 // pred_check_branch
      %29 = sbr.rel (0) target = $region9
    $region8: #{tpu_custom_call.1} parent=1 // pred_region
      %s31 = ssub.s32 2048, 2048
      %32 = vsyncadd [#allocation6], %s31
      %s33 = sshll.u32 [#allocation5], 4
      %s34 = int_to_ptr.vmem [resolvable:$true] %s33
      %39 = dma.hbm_to_vmem [thread:$0]  %s1, 2048, %s34, [#allocation6], 128, 128, 8
    $region9: #{tpu_custom_call.1} parent=1 // pred_fallthru
      _
    // Predicated region
    $region10: #{tpu_custom_call.1} parent=1 // pred_check
      _
    $region11: #{tpu_custom_call.1} parent=1 // pred_check_branch
      %41 = sbr.rel (0) target = $region13
    $region12: #{tpu_custom_call.1} parent=1 // pred_region
      _
    $region13: #{tpu_custom_call.1} parent=1 // pred_fallthru
      _
    // Predicated region
    $region14: #{tpu_custom_call.1} parent=1 // pred_check
      _
    $region15: #{tpu_custom_call.1} parent=1 // pred_check_branch
      %43 = sbr.rel (0) target = $region17
    $region16: #{tpu_custom_call.1} parent=1 // pred_region
      %s45 = ssub.s32 2048, 2048
      %46 = vsyncadd [#allocation6], %s45
      %s47 = sshll.u32 [#allocation7], 4
      %s48 = int_to_ptr.vmem [resolvable:$true] %s47
      %53 = dma.hbm_to_vmem [thread:$0]  %s3, 2048, %s48, [#allocation6], 128, 128, 8
    $region17: #{tpu_custom_call.1} parent=1 // pred_fallthru
      _
    // Predicated region
    $region18: #{tpu_custom_call.1} parent=1 // pred_check
      _
    $region19: #{tpu_custom_call.1} parent=1 // pred_check_branch
      %55 = sbr.rel (0) target = $region21
    $region20: #{tpu_custom_call.1} parent=1 // pred_region
      _
    $region21: #{tpu_custom_call.1} parent=1 // pred_fallthru
      _
    // Predicated region
    $region22: #{tpu_custom_call.1} parent=1 // pred_check
      _
    $region23: #{tpu_custom_call.1} parent=1 // pred_check_branch
      %57 = sbr.rel (0) target = $region25
    $region24: #{tpu_custom_call.1} parent=1 // pred_region
      %s59 = ssub.s32 2048, 2048
      %60 = vsyncadd [#allocation9], %s59
      %s61 = sshll.u32 [#allocation8], 4
      %s62 = int_to_ptr.vmem [resolvable:$true] %s61
      %67 = dma.hbm_to_vmem [thread:$0]  %s5, 2048, %s62, [#allocation9], 128, 128, 8
    $region25: #{tpu_custom_call.1} parent=1 // pred_fallthru
      _
    // Predicated region
    $region26: #{tpu_custom_call.1} parent=1 // pred_check
      _
    $region27: #{tpu_custom_call.1} parent=1 // pred_check_branch
      %69 = sbr.rel (0) target = $region29
    $region28: #{tpu_custom_call.1} parent=1 // pred_region
      _
    $region29: #{tpu_custom_call.1} parent=1 // pred_fallthru
      _
    // Predicated region
    $region30: #{tpu_custom_call.1} parent=1 // pred_check
      _
    $region31: #{tpu_custom_call.1} parent=1 // pred_check_branch
      %71 = sbr.rel (0) target = $region33
    $region32: #{tpu_custom_call.1} parent=1 // pred_region
      %72 = dma.done [#allocation3], 512
    $region33: #{tpu_custom_call.1} parent=1 // pred_fallthru
      _
    // Predicated region
    $region34: #{tpu_custom_call.1} parent=1 // pred_check
      _
    $region35: #{tpu_custom_call.1} parent=1 // pred_check_branch
      %74 = sbr.rel (0) target = $region37
    $region36: #{tpu_custom_call.1} parent=1 // pred_region
      %75 = dma.done [#allocation6], 2048
    $region37: #{tpu_custom_call.1} parent=1 // pred_fallthru
      _
    // Predicated region
    $region38: #{tpu_custom_call.1} parent=1 // pred_check
      _
    $region39: #{tpu_custom_call.1} parent=1 // pred_check_branch
      %77 = sbr.rel (0) target = $region41
    $region40: #{tpu_custom_call.1} parent=1 // pred_region
      %78 = dma.done [#allocation6], 2048
    $region41: #{tpu_custom_call.1} parent=1 // pred_fallthru
      _
    // Predicated region
    $region42: #{tpu_custom_call.1} parent=1 // pred_check
      _
    $region43: #{tpu_custom_call.1} parent=1 // pred_check_branch
      %80 = sbr.rel (0) target = $region45
    $region44: #{tpu_custom_call.1} parent=1 // pred_region
      %81 = dma.done [#allocation9], 2048
    $region45: #{tpu_custom_call.1} parent=1 // pred_fallthru
      _
    %v82 = vld [vmem:[#allocation2] sm:$0xff]
    %v83 = vld [vmem:[#allocation2 + $0x8] sm:$0xff]
    %v84 = vld [vmem:[#allocation2 + $0x10] sm:$0xff]
    %v85 = vld [vmem:[#allocation2 + $0x18] sm:$0xff]
    %v86 = vld [vmem:[#allocation5] sm:$0xff]
    %v87 = vld [vmem:[#allocation5 + $0x8] sm:$0xff]
    %v88 = vld [vmem:[#allocation5 + $0x10] sm:$0xff]
    %v89 = vld [vmem:[#allocation5 + $0x18] sm:$0xff]
    %v90 = vld [vmem:[#allocation5 + $0x20] sm:$0xff]
    %v91 = vld [vmem:[#allocation5 + $0x28] sm:$0xff]
    %v92 = vld [vmem:[#allocation5 + $0x30] sm:$0xff]
    %v93 = vld [vmem:[#allocation5 + $0x38] sm:$0xff]
    %v94 = vld [vmem:[#allocation5 + $0x40] sm:$0xff]
    %v95 = vld [vmem:[#allocation5 + $0x48] sm:$0xff]
    %v96 = vld [vmem:[#allocation5 + $0x50] sm:$0xff]
    %v97 = vld [vmem:[#allocation5 + $0x58] sm:$0xff]
    %v98 = vld [vmem:[#allocation5 + $0x60] sm:$0xff]
    %v99 = vld [vmem:[#allocation5 + $0x68] sm:$0xff]
    %v100 = vld [vmem:[#allocation5 + $0x70] sm:$0xff]
    %v101 = vld [vmem:[#allocation5 + $0x78] sm:$0xff]
    %v102 = vld [vmem:[%s2] sm:$0x1]
    %v104 = vlaneseq
    %v105 = vshrl.u32 %v104, 7
    %v106 = vsub.s32 0, %v105
    %v107 = vrot.slane %v102, %v106
    %109 = vmatprep.subr.mxu0 0.0
    %110 = vmatpush1.msra.mxu0 %v86
    %111 = vmatprep.subr.mxu0 0.0
    %112 = vmatpush1.msra.mxu0 %v87
    %113 = vmatprep.subr.mxu0 0.0
    %114 = vmatpush1.msra.mxu0 %v88
    %115 = vmatprep.subr.mxu0 0.0
    %116 = vmatpush1.msra.mxu0 %v89
    %117 = vmatprep.subr.mxu0 0.0
    %118 = vmatpush1.msra.mxu0 %v90
    %119 = vmatprep.subr.mxu0 0.0
    %120 = vmatpush1.msra.mxu0 %v91
    %121 = vmatprep.subr.mxu0 0.0
    %122 = vmatpush1.msra.mxu0 %v92
    %123 = vmatprep.subr.mxu0 0.0
    %124 = vmatpush1.msra.mxu0 %v93
    %125 = vmatprep.subr.mxu0 0.0
    %126 = vmatpush1.msra.mxu0 %v94
    %127 = vmatprep.subr.mxu0 0.0
    %128 = vmatpush1.msra.mxu0 %v95
    %129 = vmatprep.subr.mxu0 0.0
    %130 = vmatpush1.msra.mxu0 %v96
    %131 = vmatprep.subr.mxu0 0.0
    %132 = vmatpush1.msra.mxu0 %v97
    %133 = vmatprep.subr.mxu0 0.0
    %134 = vmatpush1.msra.mxu0 %v98
    %135 = vmatprep.subr.mxu0 0.0
    %136 = vmatpush1.msra.mxu0 %v99
    %137 = vmatprep.subr.mxu0 0.0
    %138 = vmatpush1.msra.mxu0 %v100
    %139 = vmatprep.subr.mxu0 0.0
    %140 = vmatpush1.msra.mxu0 %v101
    %141 = vmatprep.subr.mxu0 0.0
    %142 = vmatpush1.msra.mxu0 0.0
    %143 = vmatprep.subr.mxu0 0.0
    %144 = vmatpush1.msra.mxu0 0.0
    %145 = vmatprep.subr.mxu0 0.0
    %146 = vmatpush1.msra.mxu0 0.0
    %147 = vmatprep.subr.mxu0 0.0
    %148 = vmatpush1.msra.mxu0 0.0
    %149 = vmatprep.subr.mxu0 0.0
    %150 = vmatpush1.msra.mxu0 0.0
    %151 = vmatprep.subr.mxu0 0.0
    %152 = vmatpush1.msra.mxu0 0.0
    %153 = vmatprep.subr.mxu0 0.0
    %154 = vmatpush1.msra.mxu0 0.0
    %155 = vmatprep.subr.mxu0 0.0
    %156 = vmatpush1.msra.mxu0 0.0
    %157 = vmatprep.subr.mxu0 0.0
    %158 = vmatpush1.msra.mxu0 0.0
    %159 = vmatprep.subr.mxu0 0.0
    %160 = vmatpush1.msra.mxu0 0.0
    %161 = vmatprep.subr.mxu0 0.0
    %162 = vmatpush1.msra.mxu0 0.0
    %163 = vmatprep.subr.mxu0 0.0
    %164 = vmatpush1.msra.mxu0 0.0
    %165 = vmatprep.subr.mxu0 0.0
    %166 = vmatpush1.msra.mxu0 0.0
    %167 = vmatprep.subr.mxu0 0.0
    %168 = vmatpush1.msra.mxu0 0.0
    %169 = vmatprep.subr.mxu0 0.0
    %170 = vmatpush1.msra.mxu0 0.0
    %171 = vmatprep.subr.mxu0 0.0
    %172 = vmatpush1.msra.mxu0 0.0
    %173 = vmatprep.mubr.f32.mxu0 0.0
    %174 = vmatmul.mubr.f32.gmra.mrb[0].mxu0 %v82
    %v175 = vpop.f32.mrb[0].mxu0
    %v176 = vadd.f32 %v107, %v175
    %v177 = vpop.f32.mrb[0].mxu0
    %178 = vmatprep.mubr.f32.mxu0 0.0
    %179 = vmatmul.mubr.f32.gmra.mrb[0].mxu0 %v83
    %v180 = vpop.f32.mrb[0].mxu0
    %v181 = vadd.f32 %v107, %v180
    %v182 = vpop.f32.mrb[0].mxu0
    %183 = vmatprep.mubr.f32.mxu0 0.0
    %184 = vmatmul.mubr.f32.gmra.mrb[0].mxu0 %v84
    %v185 = vpop.f32.mrb[0].mxu0
    %v186 = vadd.f32 %v107, %v185
    %v187 = vpop.f32.mrb[0].mxu0
    %188 = vmatprep.mubr.f32.mxu0 0.0
    %189 = vmatmul.mubr.f32.gmra.mrb[0].mxu0 %v85
    %v190 = vpop.f32.mrb[0].mxu0
    %v191 = vadd.f32 %v107, %v190
    %v192 = vpop.f32.mrb[0].mxu0
    %193 = vdwg.mxu0
    %v194 = vtanh.pop %v176
    %v195 = vtanh.pop %v181
    %v196 = vtanh.pop %v186
    %v197 = vtanh.pop %v191
    %v198 = vld [vmem:[#allocation7] sm:$0xff]
    %v199 = vld [vmem:[#allocation7 + $0x8] sm:$0xff]
    %v200 = vld [vmem:[#allocation7 + $0x10] sm:$0xff]
    %v201 = vld [vmem:[#allocation7 + $0x18] sm:$0xff]
    %v202 = vld [vmem:[#allocation7 + $0x20] sm:$0xff]
    %v203 = vld [vmem:[#allocation7 + $0x28] sm:$0xff]
    %v204 = vld [vmem:[#allocation7 + $0x30] sm:$0xff]
    %v205 = vld [vmem:[#allocation7 + $0x38] sm:$0xff]
    %v206 = vld [vmem:[#allocation7 + $0x40] sm:$0xff]
    %v207 = vld [vmem:[#allocation7 + $0x48] sm:$0xff]
    %v208 = vld [vmem:[#allocation7 + $0x50] sm:$0xff]
    %v209 = vld [vmem:[#allocation7 + $0x58] sm:$0xff]
    %v210 = vld [vmem:[#allocation7 + $0x60] sm:$0xff]
    %v211 = vld [vmem:[#allocation7 + $0x68] sm:$0xff]
    %v212 = vld [vmem:[#allocation7 + $0x70] sm:$0xff]
    %v213 = vld [vmem:[#allocation7 + $0x78] sm:$0xff]
    %v214 = vld [vmem:[%s4] sm:$0x1]
    %v216 = vlaneseq
    %v217 = vshrl.u32 %v216, 7
    %v218 = vsub.s32 0, %v217
    %v219 = vrot.slane %v214, %v218
    %221 = vmatprep.subr.mxu0 0.0
    %222 = vmatpush1.msra.mxu0 %v198
    %223 = vmatprep.subr.mxu0 0.0
    %224 = vmatpush1.msra.mxu0 %v199
    %225 = vmatprep.subr.mxu0 0.0
    %226 = vmatpush1.msra.mxu0 %v200
    %227 = vmatprep.subr.mxu0 0.0
    %228 = vmatpush1.msra.mxu0 %v201
    %229 = vmatprep.subr.mxu0 0.0
    %230 = vmatpush1.msra.mxu0 %v202
    %231 = vmatprep.subr.mxu0 0.0
    %232 = vmatpush1.msra.mxu0 %v203
    %233 = vmatprep.subr.mxu0 0.0
    %234 = vmatpush1.msra.mxu0 %v204
    %235 = vmatprep.subr.mxu0 0.0
    %236 = vmatpush1.msra.mxu0 %v205
    %237 = vmatprep.subr.mxu0 0.0
    %238 = vmatpush1.msra.mxu0 %v206
    %239 = vmatprep.subr.mxu0 0.0
    %240 = vmatpush1.msra.mxu0 %v207
    %241 = vmatprep.subr.mxu0 0.0
    %242 = vmatpush1.msra.mxu0 %v208
    %243 = vmatprep.subr.mxu0 0.0
    %244 = vmatpush1.msra.mxu0 %v209
    %245 = vmatprep.subr.mxu0 0.0
    %246 = vmatpush1.msra.mxu0 %v210
    %247 = vmatprep.subr.mxu0 0.0
    %248 = vmatpush1.msra.mxu0 %v211
    %249 = vmatprep.subr.mxu0 0.0
    %250 = vmatpush1.msra.mxu0 %v212
    %251 = vmatprep.subr.mxu0 0.0
    %252 = vmatpush1.msra.mxu0 %v213
    %253 = vmatprep.subr.mxu0 0.0
    %254 = vmatpush1.msra.mxu0 0.0
    %255 = vmatprep.subr.mxu0 0.0
    %256 = vmatpush1.msra.mxu0 0.0
    %257 = vmatprep.subr.mxu0 0.0
    %258 = vmatpush1.msra.mxu0 0.0
    %259 = vmatprep.subr.mxu0 0.0
    %260 = vmatpush1.msra.mxu0 0.0
    %261 = vmatprep.subr.mxu0 0.0
    %262 = vmatpush1.msra.mxu0 0.0
    %263 = vmatprep.subr.mxu0 0.0
    %264 = vmatpush1.msra.mxu0 0.0
    %265 = vmatprep.subr.mxu0 0.0
    %266 = vmatpush1.msra.mxu0 0.0
    %267 = vmatprep.subr.mxu0 0.0
    %268 = vmatpush1.msra.mxu0 0.0
    %269 = vmatprep.subr.mxu0 0.0
    %270 = vmatpush1.msra.mxu0 0.0
    %271 = vmatprep.subr.mxu0 0.0
    %272 = vmatpush1.msra.mxu0 0.0
    %273 = vmatprep.subr.mxu0 0.0
    %274 = vmatpush1.msra.mxu0 0.0
    %275 = vmatprep.subr.mxu0 0.0
    %276 = vmatpush1.msra.mxu0 0.0
    %277 = vmatprep.subr.mxu0 0.0
    %278 = vmatpush1.msra.mxu0 0.0
    %279 = vmatprep.subr.mxu0 0.0
    %280 = vmatpush1.msra.mxu0 0.0
    %281 = vmatprep.subr.mxu0 0.0
    %282 = vmatpush1.msra.mxu0 0.0
    %283 = vmatprep.subr.mxu0 0.0
    %284 = vmatpush1.msra.mxu0 0.0
    %285 = vmatprep.mubr.f32.mxu0 0.0
    %286 = vmatmul.mubr.f32.gmra.mrb[0].mxu0 %v194
    %v287 = vpop.f32.mrb[0].mxu0
    %v288 = vadd.f32 %v219, %v287
    %v289 = vpop.f32.mrb[0].mxu0
    %290 = vmatprep.mubr.f32.mxu0 0.0
    %291 = vmatmul.mubr.f32.gmra.mrb[0].mxu0 %v195
    %v292 = vpop.f32.mrb[0].mxu0
    %v293 = vadd.f32 %v219, %v292
    %v294 = vpop.f32.mrb[0].mxu0
    %295 = vmatprep.mubr.f32.mxu0 0.0
    %296 = vmatmul.mubr.f32.gmra.mrb[0].mxu0 %v196
    %v297 = vpop.f32.mrb[0].mxu0
    %v298 = vadd.f32 %v219, %v297
    %v299 = vpop.f32.mrb[0].mxu0
    %300 = vmatprep.mubr.f32.mxu0 0.0
    %301 = vmatmul.mubr.f32.gmra.mrb[0].mxu0 %v197
    %v302 = vpop.f32.mrb[0].mxu0
    %v303 = vadd.f32 %v219, %v302
    %v304 = vpop.f32.mrb[0].mxu0
    %305 = vdwg.mxu0
    %v306 = vtanh.pop %v288
    %v307 = vtanh.pop %v293
    %v308 = vtanh.pop %v298
    %v309 = vtanh.pop %v303
    %v310 = vld [vmem:[#allocation8] sm:$0xff]
    %v311 = vld [vmem:[#allocation8 + $0x8] sm:$0xff]
    %v312 = vld [vmem:[#allocation8 + $0x10] sm:$0xff]
    %v313 = vld [vmem:[#allocation8 + $0x18] sm:$0xff]
    %v314 = vld [vmem:[#allocation8 + $0x20] sm:$0xff]
    %v315 = vld [vmem:[#allocation8 + $0x28] sm:$0xff]
    %v316 = vld [vmem:[#allocation8 + $0x30] sm:$0xff]
    %v317 = vld [vmem:[#allocation8 + $0x38] sm:$0xff]
    %v318 = vld [vmem:[#allocation8 + $0x40] sm:$0xff]
    %v319 = vld [vmem:[#allocation8 + $0x48] sm:$0xff]
    %v320 = vld [vmem:[#allocation8 + $0x50] sm:$0xff]
    %v321 = vld [vmem:[#allocation8 + $0x58] sm:$0xff]
    %v322 = vld [vmem:[#allocation8 + $0x60] sm:$0xff]
    %v323 = vld [vmem:[#allocation8 + $0x68] sm:$0xff]
    %v324 = vld [vmem:[#allocation8 + $0x70] sm:$0xff]
    %v325 = vld [vmem:[#allocation8 + $0x78] sm:$0xff]
    %v326 = vld [vmem:[%s6] sm:$0x1]
    %v328 = vlaneseq
    %v329 = vshrl.u32 %v328, 7
    %v330 = vsub.s32 0, %v329
    %v331 = vrot.slane %v326, %v330
    %333 = vmatprep.subr.mxu0 0.0
    %334 = vmatpush1.msra.mxu0 %v310
    %335 = vmatprep.subr.mxu0 0.0
    %336 = vmatpush1.msra.mxu0 %v311
    %337 = vmatprep.subr.mxu0 0.0
    %338 = vmatpush1.msra.mxu0 %v312
    %339 = vmatprep.subr.mxu0 0.0
    %340 = vmatpush1.msra.mxu0 %v313
    %341 = vmatprep.subr.mxu0 0.0
    %342 = vmatpush1.msra.mxu0 %v314
    %343 = vmatprep.subr.mxu0 0.0
    %344 = vmatpush1.msra.mxu0 %v315
    %345 = vmatprep.subr.mxu0 0.0
    %346 = vmatpush1.msra.mxu0 %v316
    %347 = vmatprep.subr.mxu0 0.0
    %348 = vmatpush1.msra.mxu0 %v317
    %349 = vmatprep.subr.mxu0 0.0
    %350 = vmatpush1.msra.mxu0 %v318
    %351 = vmatprep.subr.mxu0 0.0
    %352 = vmatpush1.msra.mxu0 %v319
    %353 = vmatprep.subr.mxu0 0.0
    %354 = vmatpush1.msra.mxu0 %v320
    %355 = vmatprep.subr.mxu0 0.0
    %356 = vmatpush1.msra.mxu0 %v321
    %357 = vmatprep.subr.mxu0 0.0
    %358 = vmatpush1.msra.mxu0 %v322
    %359 = vmatprep.subr.mxu0 0.0
    %360 = vmatpush1.msra.mxu0 %v323
    %361 = vmatprep.subr.mxu0 0.0
    %362 = vmatpush1.msra.mxu0 %v324
    %363 = vmatprep.subr.mxu0 0.0
    %364 = vmatpush1.msra.mxu0 %v325
    %365 = vmatprep.subr.mxu0 0.0
    %366 = vmatpush1.msra.mxu0 0.0
    %367 = vmatprep.subr.mxu0 0.0
    %368 = vmatpush1.msra.mxu0 0.0
    %369 = vmatprep.subr.mxu0 0.0
    %370 = vmatpush1.msra.mxu0 0.0
    %371 = vmatprep.subr.mxu0 0.0
    %372 = vmatpush1.msra.mxu0 0.0
    %373 = vmatprep.subr.mxu0 0.0
    %374 = vmatpush1.msra.mxu0 0.0
    %375 = vmatprep.subr.mxu0 0.0
    %376 = vmatpush1.msra.mxu0 0.0
    %377 = vmatprep.subr.mxu0 0.0
    %378 = vmatpush1.msra.mxu0 0.0
    %379 = vmatprep.subr.mxu0 0.0
    %380 = vmatpush1.msra.mxu0 0.0
    %381 = vmatprep.subr.mxu0 0.0
    %382 = vmatpush1.msra.mxu0 0.0
    %383 = vmatprep.subr.mxu0 0.0
    %384 = vmatpush1.msra.mxu0 0.0
    %385 = vmatprep.subr.mxu0 0.0
    %386 = vmatpush1.msra.mxu0 0.0
    %387 = vmatprep.subr.mxu0 0.0
    %388 = vmatpush1.msra.mxu0 0.0
    %389 = vmatprep.subr.mxu0 0.0
    %390 = vmatpush1.msra.mxu0 0.0
    %391 = vmatprep.subr.mxu0 0.0
    %392 = vmatpush1.msra.mxu0 0.0
    %393 = vmatprep.subr.mxu0 0.0
    %394 = vmatpush1.msra.mxu0 0.0
    %395 = vmatprep.subr.mxu0 0.0
    %396 = vmatpush1.msra.mxu0 0.0
    %397 = vmatprep.mubr.f32.mxu0 0.0
    %398 = vmatmul.mubr.f32.gmra.mrb[0].mxu0 %v306
    %v399 = vpop.f32.mrb[0].mxu0
    %v400 = vadd.f32 %v331, %v399
    %v401 = vpop.f32.mrb[0].mxu0
    %402 = vmatprep.mubr.f32.mxu0 0.0
    %403 = vmatmul.mubr.f32.gmra.mrb[0].mxu0 %v307
    %v404 = vpop.f32.mrb[0].mxu0
    %v405 = vadd.f32 %v331, %v404
    %v406 = vpop.f32.mrb[0].mxu0
    %407 = vmatprep.mubr.f32.mxu0 0.0
    %408 = vmatmul.mubr.f32.gmra.mrb[0].mxu0 %v308
    %v409 = vpop.f32.mrb[0].mxu0
    %v410 = vadd.f32 %v331, %v409
    %v411 = vpop.f32.mrb[0].mxu0
    %412 = vmatprep.mubr.f32.mxu0 0.0
    %413 = vmatmul.mubr.f32.gmra.mrb[0].mxu0 %v309
    %v414 = vpop.f32.mrb[0].mxu0
    %v415 = vadd.f32 %v331, %v414
    %v416 = vpop.f32.mrb[0].mxu0
    %417 = vdwg.mxu0
    %418 = vst [vmem:[#allocation10] sm:$0xff] %v400
    %419 = vst [vmem:[#allocation10 + $0x8] sm:$0xff] %v405
    %420 = vst [vmem:[#allocation10 + $0x10] sm:$0xff] %v410
    %421 = vst [vmem:[#allocation10 + $0x18] sm:$0xff] %v415
    // Predicated region
    $region46: #{tpu_custom_call.1} parent=1 // pred_check
      _
    $region47: #{tpu_custom_call.1} parent=1 // pred_check_branch
      %423 = sbr.rel (0) target = $region49
    $region48: #{tpu_custom_call.1} parent=1 // pred_region
      %s425 = ssub.s32 512, 512
      %426 = vsyncadd [#allocation4], %s425
      %s427 = sshll.u32 [#allocation10], 4
      %s428 = int_to_ptr.vmem [resolvable:$true] %s427
      %433 = dma.vmem_to_hbm [thread:$0]  %s428, 512, %s7, [#allocation4], 128, 128, 8
    $region49: #{tpu_custom_call.1} parent=1 // pred_fallthru
      _
    // Predicated region
    $region50: #{tpu_custom_call.1} parent=1 // pred_check
      _
    $region51: #{tpu_custom_call.1} parent=1 // pred_check_branch
      %435 = sbr.rel (0) target = $region53
    $region52: #{tpu_custom_call.1} parent=1 // pred_region
      %436 = dma.done [#allocation4], 512
    $region53: #{tpu_custom_call.1} parent=1 // pred_fallthru
      _
    %437 = vsyncpa [#allocation3], 1
    %438 = vsyncpa [#allocation6], 1
    %439 = vsyncpa [#allocation9], 1
    %440 = vsyncpa [#allocation4], 1

</llo_original>
